<compile_context>
chip_gen: v6e
topology: v6e:2x2x1
jax: 0.10.0
libtpu: 0.0.40
codegen_flags: <defaults>
</compile_context>

<pallas_src>
import collections
import functools

import jax
import jax.numpy as jnp
from jax.experimental import pallas as pl
from jax.experimental.pallas import tpu as pltpu

_LANE = 128
_SUBLANE = 8
_MAX_BATCH_TILE = 1024  # rows; amortizes ~0.35us/step while bounding VMEM


def _round_up(v, m):
    return ((v + m - 1) // m) * m


EncoderConfig = collections.namedtuple(
    "EncoderConfig", ["latent", "latent_p", "use_buffered", "vmem_cap_bytes"]
)


# ---------------------------------------------------------------------------
# One-time hardware / feature probes (run OUTSIDE jit, cached)
# ---------------------------------------------------------------------------
@functools.lru_cache(maxsize=None)
def _vmem_capacity_bytes():
    try:
        return int(pltpu.get_tpu_info().vmem_capacity_bytes)
    except Exception:
        return 64 << 20  # conservative: v7x per-TensorCore VMEM


@functools.lru_cache(maxsize=None)
def _probe_buffered_single():
    """Does this Pallas support single-buffering (pl.Buffered(1)) on TPU?"""
    if not hasattr(pl, "Buffered"):
        return False

    def _k(x_ref, w_ref, o_ref):
        o_ref[...] = x_ref[...] + w_ref[...]

    try:
        w_spec = pl.BlockSpec((8, 128), lambda i: (0, 0),
                              pipeline_mode=pl.Buffered(1))
        fn = pl.pallas_call(
            _k,
            out_shape=jax.ShapeDtypeStruct((16, 128), jnp.float32),
            grid=(2,),
            in_specs=[pl.BlockSpec((8, 128), lambda i: (i, 0)), w_spec],
            out_specs=pl.BlockSpec((8, 128), lambda i: (i, 0)),
        )
        x = jnp.zeros((16, 128), jnp.float32)
        w = jnp.zeros((8, 128), jnp.float32)
        jax.jit(fn).lower(x, w).compile()
        return True
    except Exception:
        return False


# ---------------------------------------------------------------------------
# Kernel
# ---------------------------------------------------------------------------
def _make_encoder_kernel(num_hidden_layers):
    """Fused per-batch-tile kernel:
       h   = relu(...relu(x @ W0 + b0)...)
       out = h @ W_head + b_head          (W_head = [Wm | 0 | Wv | 0], lane-aligned)
    Weights may be f32 or bf16; accumulation / bias / ReLU are always f32.
    """

    def kernel(*refs):
        # refs layout: x, (w_i, b_i) * L, w_head, b_head, out
        x_ref = refs[0]
        idx = 1
        h = x_ref[...]  # f32 activations
        # Python-unrolled at trace time (no repeated broadcast_in_dim in a loop).
        for _ in range(num_hidden_layers):
            w = refs[idx][...]
            b = refs[idx + 1][...]
            idx += 2
            h = jnp.dot(h.astype(w.dtype), w,
                        preferred_element_type=jnp.float32) + b
            h = jnp.maximum(h, 0.0)  # ReLU in f32

        w_head = refs[idx][...]
        b_head = refs[idx + 1][...]
        out_ref = refs[idx + 2]
        out_ref[...] = (
            jnp.dot(h.astype(w_head.dtype), w_head,
                    preferred_element_type=jnp.float32) + b_head
        )

    return kernel


# ---------------------------------------------------------------------------
# Parameters (mimicking nn.Linear's uniform init; weights stored [in, out])
# ---------------------------------------------------------------------------
def init_encoder_params(key, layer_sizes, latent_size, conditional, num_labels):
    sizes = list(layer_sizes)
    if conditional:
        sizes[0] += num_labels

    params = {"mlp": []}
    for in_size, out_size in zip(sizes[:-1], sizes[1:]):
        key, kw, kb = jax.random.split(key, 3)
        bound = 1.0 / jnp.sqrt(in_size)
        w = jax.random.uniform(kw, (in_size, out_size), jnp.float32, -bound, bound)
        b = jax.random.uniform(kb, (1, out_size), jnp.float32, -bound, bound)
        params["mlp"].append((w, b))

    last = sizes[-1]
    bound = 1.0 / jnp.sqrt(last)
    key, k1, k2, k3, k4 = jax.random.split(key, 5)
    params["wm"] = jax.random.uniform(k1, (last, latent_size), jnp.float32, -bound, bound)
    params["bm"] = jax.random.uniform(k2, (1, latent_size), jnp.float32, -bound, bound)
    params["wv"] = jax.random.uniform(k3, (last, latent_size), jnp.float32, -bound, bound)
    params["bv"] = jax.random.uniform(k4, (1, latent_size), jnp.float32, -bound, bound)
    return params


def idx2onehot(idx, n):
    # JAX equivalent of the PyTorch helper (layout glue, not hot path).
    if idx.ndim == 1:
        idx = idx[:, None]
    return jax.nn.one_hot(idx[:, 0], n, dtype=jnp.float32)


# ---------------------------------------------------------------------------
# One-time parameter packing (perf review item #1)
# ---------------------------------------------------------------------------
def prepare_params(params, *, weight_dtype=jnp.float32):
    """Pad weights/biases to lane multiples and fuse the two heads, ONCE.

    weight_dtype=jnp.bfloat16 enables the MXU-native fast path on v6e/v7x
    (activations cast per-dot in-kernel, f32 accumulation; biases stay f32).
    """
    mlp = params["mlp"]
    dims = [mlp[0][0].shape[0]] + [w.shape[1] for w, _ in mlp] if mlp else [params["wm"].shape[0]]
    dims_p = [_round_up(d, _LANE) for d in dims]

    layers = []
    for li, (w, b) in enumerate(mlp):
        in_p, out_p = dims_p[li], dims_p[li + 1]
        w_p = jnp.zeros((in_p, out_p), weight_dtype)
        w_p = w_p.at[: w.shape[0], : w.shape[1]].set(w.astype(weight_dtype))
        b_p = jnp.zeros((1, out_p), jnp.float32).at[:, : b.shape[1]].set(b)
        layers.append((w_p, b_p))

    latent = params["wm"].shape[1]
    latent_p = _round_up(latent, _LANE)
    last_p = dims_p[-1]
    head_out_p = 2 * latent_p  # lane-aligned: log_var block starts at column latent_p

    w_head = jnp.zeros((last_p, head_out_p), weight_dtype)
    w_head = w_head.at[: params["wm"].shape[0], :latent].set(
        params["wm"].astype(weight_dtype))
    w_head = w_head.at[: params["wv"].shape[0], latent_p: latent_p + latent].set(
        params["wv"].astype(weight_dtype))
    b_head = jnp.zeros((1, head_out_p), jnp.float32)
    b_head = b_head.at[:, :latent].set(params["bm"])
    b_head = b_head.at[:, latent_p: latent_p + latent].set(params["bv"])

    packed = {"layers": tuple(layers), "head": (w_head, b_head)}
    config = EncoderConfig(
        latent=int(latent),
        latent_p=int(latent_p),
        use_buffered=bool(_probe_buffered_single()),
        vmem_cap_bytes=int(_vmem_capacity_bytes()),
    )
    return packed, config


def _choose_batch_tile(batch):
    batch_s = _round_up(max(batch, 1), _SUBLANE)
    if batch_s <= _SUBLANE:
        tile = batch_s
    else:
        # >= 2 grid steps whenever possible so v7x's 2 TensorCores both engage
        # (on 1-TC chips the extra ~0.35us step is negligible).
        tile = _round_up(-(-batch_s // 2), _SUBLANE)
    return min(tile, _MAX_BATCH_TILE)


# ---------------------------------------------------------------------------
# Forward wrapper
# ---------------------------------------------------------------------------
@functools.partial(jax.jit, static_argnames=("config", "conditional", "num_labels"))
def encoder_forward(packed, x, c=None, *, config, conditional=False, num_labels=10):
    if conditional:
        c_oh = idx2onehot(c, n=num_labels)
        x = jnp.concatenate((x.astype(jnp.float32), c_oh), axis=-1)
    else:
        x = x.astype(jnp.float32)

    batch, in_dim = x.shape
    layers = packed["layers"]
    w_head, b_head = packed["head"]
    latent, latent_p = config.latent, config.latent_p
    in_p = layers[0][0].shape[0] if layers else w_head.shape[0]
    head_out_p = w_head.shape[1]
    widths = [in_p] + [w.shape[1] for w, _ in layers] + [head_out_p]

    tile_b = _choose_batch_tile(batch)
    batch_p = _round_up(batch, tile_b)

    # Single fused pad of the activations only (params were pre-padded at init).
    x_p = jnp.pad(x, ((0, batch_p - batch), (0, in_p - in_dim)))

    resident_kw = {"pipeline_mode": pl.Buffered(1)} if config.use_buffered else {}

    operands = [x_p]
    in_specs = [pl.BlockSpec((tile_b, in_p), lambda i: (i, 0))]
    for w_p, b_p in layers:
        operands += [w_p, b_p]
        in_specs += [
            pl.BlockSpec(w_p.shape, lambda i: (0, 0), **resident_kw),
            pl.BlockSpec(b_p.shape, lambda i: (0, 0), **resident_kw),
        ]
    operands += [w_head, b_head]
    in_specs += [
        pl.BlockSpec(w_head.shape, lambda i: (0, 0), **resident_kw),
        pl.BlockSpec(b_head.shape, lambda i: (0, 0), **resident_kw),
    ]
    out_spec = pl.BlockSpec((tile_b, head_out_p), lambda i: (i, 0))
    grid = (batch_p // tile_b,)

    # ---- advisory cost estimate (padded dims -> over-reports; advisory only)
    flops = 2 * batch_p * sum(widths[i] * widths[i + 1] for i in range(len(widths) - 1))
    param_bytes = sum(int(a.size) * a.dtype.itemsize for a in operands[1:])
    bytes_accessed = int(x_p.size) * 4 + param_bytes + batch_p * head_out_p * 4
    cost = pl.CostEstimate(flops=int(flops), transcendentals=0,
                           bytes_accessed=int(bytes_accessed))

    # ---- generation-aware VMEM budget -------------------------------------
    resident = param_bytes * (1 if config.use_buffered else 2)
    streamed = 2 * 4 * tile_b * (in_p + head_out_p)      # double-buffered x/out tiles
    scratch = 4 * 4 * tile_b * max(widths)               # f32 intermediate activations
    cap = max(int(0.75 * config.vmem_cap_bytes), 32 << 20)
    vmem_limit = int(min(max(2 * (resident + streamed + scratch), 32 << 20), cap))

    kernel = _make_encoder_kernel(len(layers))

    out = pl.pallas_call(
        kernel,
        out_shape=jax.ShapeDtypeStruct((batch_p, head_out_p), jnp.float32),
        grid=grid,
        in_specs=in_specs,
        out_specs=out_spec,
        compiler_params=pltpu.CompilerParams(
            dimension_semantics=("parallel",),
            vmem_limit_bytes=vmem_limit,
        ),
        cost_estimate=cost,
    )(*operands)

    means = out[:batch, :latent]
    log_vars = out[:batch, latent_p: latent_p + latent]   # 128-aligned slice start
    return means, log_vars


# ---------------------------------------------------------------------------
# Pure-JAX reference for correctness sanity check
# ---------------------------------------------------------------------------
def encoder_ref(params, x, c=None, *, conditional=False, num_labels=10):
    if conditional:
        x = jnp.concatenate((x, idx2onehot(c, num_labels)), axis=-1)
    h = x.astype(jnp.float32)
    for w, b in params["mlp"]:
        h = jnp.maximum(h @ w + b, 0.0)
    means = h @ params["wm"] + params["bm"]
    log_vars = h @ params["wv"] + params["bv"]
    return means, log_vars


# ---------------------------------------------------------------------------
if __name__ == "__main__":
    key = jax.random.PRNGKey(0)

    # Small CVAE-style encoder: layer_sizes=[32, 64], latent=16, conditional,
    # 10 labels -> effective input dim 42.
    layer_sizes = [32, 64]
    latent_size = 16
    conditional = True
    num_labels = 10
    batch = 32  # -> 2 batch tiles of 16 rows (exercises the parallel grid axis)

    kp, kx, kc = jax.random.split(key, 3)
    params = init_encoder_params(kp, layer_sizes, latent_size, conditional, num_labels)
    x = jax.random.normal(kx, (batch, layer_sizes[0]), jnp.float32)
    c = jax.random.randint(kc, (batch,), 0, num_labels, jnp.int32)

    m_ref, lv_ref = encoder_ref(params, x, c, conditional=conditional,
                                num_labels=num_labels)

    # ---- f32 path: exact PyTorch semantics ---------------------------------
    packed32, cfg32 = prepare_params(params, weight_dtype=jnp.float32)
    means, log_vars = encoder_forward(packed32, x, c, config=cfg32,
                                      conditional=conditional, num_labels=num_labels)
    jax.block_until_ready((means, log_vars))
    assert means.shape == (batch, latent_size)
    assert log_vars.shape == (batch, latent_size)
    assert jnp.allclose(means, m_ref, atol=1e-4, rtol=1e-4)
    assert jnp.allclose(log_vars, lv_ref, atol=1e-4, rtol=1e-4)

    # ---- bf16 MXU fast path (v6e/v7x): f32 accumulation, relaxed tolerance --
    packed16, cfg16 = prepare_params(params, weight_dtype=jnp.bfloat16)
    m16, lv16 = encoder_forward(packed16, x, c, config=cfg16,
                                conditional=conditional, num_labels=num_labels)
    jax.block_until_ready((m16, lv16))
    assert jnp.allclose(m16, m_ref, atol=5e-2, rtol=5e-2)
    assert jnp.allclose(lv16, lv_ref, atol=5e-2, rtol=5e-2)

    print("KERNEL_OK")
</pallas_src>

<mosaic_0001>
module attributes {stable_mosaic.version = 11 : i64} {
  func.func @kernel(%arg0: i32, %arg1: memref<16x128xf32, #tpu.memory_space<vmem>>, %arg2: memref<128x128xf32, #tpu.memory_space<vmem>>, %arg3: memref<1x128xf32, #tpu.memory_space<vmem>>, %arg4: memref<128x256xf32, #tpu.memory_space<vmem>>, %arg5: memref<1x256xf32, #tpu.memory_space<vmem>>, %arg6: memref<16x256xf32, #tpu.memory_space<vmem>>) attributes {dimension_semantics = [#tpu.dimension_semantics<parallel>], iteration_bounds = array<i64: 2>, scalar_prefetch = 0 : i64, scratch_operands = 0 : i64, tpu.core_type = #tpu.core_type<tc>, window_params = [{transform_indices = @transform_0, window_bounds = array<i64: 16, 128>}, {pipeline_mode = #tpu.pipeline_mode<synchronous>, transform_indices = @transform_1, window_bounds = array<i64: 128, 128>}, {pipeline_mode = #tpu.pipeline_mode<synchronous>, transform_indices = @transform_2, window_bounds = array<i64: 1, 128>}, {pipeline_mode = #tpu.pipeline_mode<synchronous>, transform_indices = @transform_3, window_bounds = array<i64: 128, 256>}, {pipeline_mode = #tpu.pipeline_mode<synchronous>, transform_indices = @transform_4, window_bounds = array<i64: 1, 256>}, {transform_indices = @transform_5, window_bounds = array<i64: 16, 256>}]} {
    %c0 = arith.constant 0 : index
    %c0_0 = arith.constant 0 : index
    %0 = vector.load %arg1[%c0, %c0_0] : memref<16x128xf32, #tpu.memory_space<vmem>>, vector<16x128xf32>
    %c0_1 = arith.constant 0 : index
    %c0_2 = arith.constant 0 : index
    %1 = vector.load %arg2[%c0_1, %c0_2] : memref<128x128xf32, #tpu.memory_space<vmem>>, vector<128x128xf32>
    %c0_3 = arith.constant 0 : index
    %c0_4 = arith.constant 0 : index
    %2 = vector.load %arg3[%c0_3, %c0_4] : memref<1x128xf32, #tpu.memory_space<vmem>>, vector<1x128xf32>
    %cst = arith.constant dense<0.000000e+00> : vector<16x128xf32>
    %3 = tpu.matmul %0, %1, %cst {dimension_numbers = #tpu.dot_dimension_numbers<[1], [0], [0], [1], [0, 0, 1, 1], [], []>} : vector<16x128xf32>, vector<128x128xf32>, vector<16x128xf32> -> vector<16x128xf32>
    %4 = vector.broadcast %2 : vector<1x128xf32> to vector<16x128xf32>
    %5 = arith.addf %3, %4 : vector<16x128xf32>
    %cst_5 = arith.constant 0.000000e+00 : f32
    %6 = vector.broadcast %cst_5 : f32 to vector<16x128xf32>
    %7 = arith.maximumf %5, %6 : vector<16x128xf32>
    %c0_6 = arith.constant 0 : index
    %c0_7 = arith.constant 0 : index
    %8 = vector.load %arg4[%c0_6, %c0_7] : memref<128x256xf32, #tpu.memory_space<vmem>>, vector<128x256xf32>
    %c0_8 = arith.constant 0 : index
    %c0_9 = arith.constant 0 : index
    %9 = vector.load %arg5[%c0_8, %c0_9] : memref<1x256xf32, #tpu.memory_space<vmem>>, vector<1x256xf32>
    %cst_10 = arith.constant dense<0.000000e+00> : vector<16x256xf32>
    %10 = tpu.matmul %7, %8, %cst_10 {dimension_numbers = #tpu.dot_dimension_numbers<[1], [0], [0], [1], [0, 0, 1, 1], [], []>} : vector<16x128xf32>, vector<128x256xf32>, vector<16x256xf32> -> vector<16x256xf32>
    %11 = vector.broadcast %9 : vector<1x256xf32> to vector<16x256xf32>
    %12 = arith.addf %10, %11 : vector<16x256xf32>
    %c0_11 = arith.constant 0 : index
    %c0_12 = arith.constant 0 : index
    %13 = vector.load %arg6[%c0_11, %c0_12] : memref<16x256xf32, #tpu.memory_space<vmem>>, vector<16x256xf32>
    tpu.vector_store %arg6[%c0_11, %c0_12], %12 {strides = array<i32>} : memref<16x256xf32, #tpu.memory_space<vmem>>, vector<16x256xf32>,
    return
  }
  func.func @transform_0(%arg0: i32) -> (i32, i32) {
    %c0_i32 = arith.constant 0 : i32
    %c0_i32_0 = arith.constant 0 : i32
    return %arg0, %c0_i32 : i32, i32
  }
  func.func @transform_1(%arg0: i32) -> (i32, i32) {
    %c0_i32 = arith.constant 0 : i32
    %c0_i32_0 = arith.constant 0 : i32
    %c0_i32_1 = arith.constant 0 : i32
    return %c0_i32, %c0_i32_0 : i32, i32
  }
  func.func @transform_2(%arg0: i32) -> (i32, i32) {
    %c0_i32 = arith.constant 0 : i32
    %c0_i32_0 = arith.constant 0 : i32
    %c0_i32_1 = arith.constant 0 : i32
    return %c0_i32, %c0_i32_0 : i32, i32
  }
  func.func @transform_3(%arg0: i32) -> (i32, i32) {
    %c0_i32 = arith.constant 0 : i32
    %c0_i32_0 = arith.constant 0 : i32
    %c0_i32_1 = arith.constant 0 : i32
    return %c0_i32, %c0_i32_0 : i32, i32
  }
  func.func @transform_4(%arg0: i32) -> (i32, i32) {
    %c0_i32 = arith.constant 0 : i32
    %c0_i32_0 = arith.constant 0 : i32
    %c0_i32_1 = arith.constant 0 : i32
    return %c0_i32, %c0_i32_0 : i32, i32
  }
  func.func @transform_5(%arg0: i32) -> (i32, i32) {
    %c0_i32 = arith.constant 0 : i32
    %c0_i32_0 = arith.constant 0 : i32
    return %arg0, %c0_i32 : i32, i32
  }
}

</mosaic_0001>

<llo_original>
// kernel: encoder_forward.1
$region0: #{encoder_forward.1}
  #allocation0 [shape = 'u32[]', space=smem, size = 0x4, offset = 0x4, fixed_abs, tag = 'smem constant byte address 0x4 - core index']
  #allocation1 [shape = 'u32[144,128]{1,0:T(1,128)}', space=vmem, size = 0x12000, scoped, tag = 'internal scratch']
  %s0 = inlined_call_operand.vmem [shape: f32[32,128], index: 0, kind: input, shape index: {}]
  %s1 = inlined_call_operand.vmem [shape: f32[128,128], index: 1, kind: input, shape index: {}]
  %s2 = inlined_call_operand.vmem [shape: f32[1,128], index: 2, kind: input, shape index: {}]
  %s3 = inlined_call_operand.hbm [shape: f32[128,256], index: 3, kind: input, shape index: {}]
  %s4 = inlined_call_operand.vmem [shape: f32[1,256], index: 4, kind: input, shape index: {}]
  %s5 = inlined_call_operand.vmem [shape: f32[32,256], index: 5, kind: output, shape index: {}]
  %s6 = sld [smem:[#allocation0]]
  $region57: #{encoder_forward.1} parent=0
    _
  %s8 = ssub.s32 1, %s6
  %s9 = scalar_select 0, %s8, %s6
  $region1: #{encoder_forward.1} parent=0
    #allocation2 [shape = 'u8[131072]{0}', space=vmem, size = 0x20000, scoped, tag = 'input window, operand 3, single buffered']
    #allocation3 [shape = 's32[2]{0}', space=sflag, size = 0x8, scoped, tag = 'scoped memory for encoder_forward.1']
    %10 = vsyncpa [#allocation3], 0
    loop: start=0, step=1, limit=4
    $region2: #{encoder_forward.1} parent=1 // loop_pre_header
      _
    $region3: #{encoder_forward.1} parent=1 // loop_header
      %s12 = sphi 0, %s16
      %p13 = scmp.ge.s32.totalorder %s12, 4
      %s22 = sphi 0, %s24
      %s25 = sphi 0, %s22
      %s26 = sphi 0, %s25
      %s42 = sphi 0, %s26
      %s46 = sphi 0, %s46
      %s48 = sphi 0, %s46
      %s49 = sphi 0, %s48
      %s63 = sphi 0, %s49
      %s67 = sphi 0, %s67
      %s69 = sphi 0, %s67
      %s70 = sphi 0, %s69
      %s84 = sphi 0, %s70
      %s88 = sphi 0, %s88
      %s90 = sphi 0, %s88
      %s91 = sphi 0, %s90
      %s105 = sphi 0, %s91
      %s109 = sphi 0, %s109
      %s111 = sphi 0, %s109
      %s112 = sphi 0, %s111
      %s126 = sphi 0, %s112
      %s132 = sphi 0, %s134
      %s135 = sphi 0, %s132
      %s136 = sphi 0, %s135
      %s152 = sphi 0, %s136
    $region4: #{encoder_forward.1} parent=1 // loop_header_branch
      %15 = sbr.rel (%p13) target = $region8
    $region5: #{encoder_forward.1} parent=1 // loop_body
      %s17 = ssub.s32 %s12, 1
      %s18 = ssub.s32 %s12, 2
      %s19 = sadd.s32 %s12, 1
      %s20 = ssub.s32 %s12, %s19
      %p21 = scmp.eq.s32.totalorder %s20, 0
      %s23 = sadd.s32 %s22, 1
      %s24 = scalar_select %p21, %s22, %s23
      %p27 = pneg %p21
      %p28 = scmp.eq.s32.totalorder %s12, 1
      %p29 = por %p27, %p28
      %p30 = scmp.ne.s32.totalorder %s22, %s25
      %p31 = scmp.eq.s32.totalorder %s12, 0
      %p32 = por %p30, %p31
      %p33 = scmp.ne.s32.totalorder %s22, %s25
      %p34 = scmp.eq.s32.totalorder %s17, 1
      %p35 = por %p33, %p34
      %p36 = scmp.ne.s32.totalorder %s25, %s26
      %p37 = scmp.eq.s32.totalorder %s17, 0
      %p38 = por %p36, %p37
      %p39 = scmp.ne.s32.totalorder %s25, %s26
      %p40 = scmp.eq.s32.totalorder %s18, 1
      %p41 = por %p39, %p40
      %p43 = scmp.ne.s32.totalorder %s26, %s42
      %p44 = scmp.eq.s32.totalorder %s18, 0
      %p45 = por %p43, %p44
      %s47 = sadd.s32 %s46, 1
      %p50 = scmp.eq.s32.totalorder %s12, 1
      %p51 = scmp.ne.s32.totalorder %s46, %s48
      %p52 = scmp.eq.s32.totalorder %s12, 0
      %p53 = por %p51, %p52
      %p54 = scmp.ne.s32.totalorder %s46, %s48
      %p55 = scmp.eq.s32.totalorder %s17, 1
      %p56 = por %p54, %p55
      %p57 = scmp.ne.s32.totalorder %s48, %s49
      %p58 = scmp.eq.s32.totalorder %s17, 0
      %p59 = por %p57, %p58
      %p60 = scmp.ne.s32.totalorder %s48, %s49
      %p61 = scmp.eq.s32.totalorder %s18, 1
      %p62 = por %p60, %p61
      %p64 = scmp.ne.s32.totalorder %s49, %s63
      %p65 = scmp.eq.s32.totalorder %s18, 0
      %p66 = por %p64, %p65
      %s68 = sadd.s32 %s67, 1
      %p71 = scmp.eq.s32.totalorder %s12, 1
      %p72 = scmp.ne.s32.totalorder %s67, %s69
      %p73 = scmp.eq.s32.totalorder %s12, 0
      %p74 = por %p72, %p73
      %p75 = scmp.ne.s32.totalorder %s67, %s69
      %p76 = scmp.eq.s32.totalorder %s17, 1
      %p77 = por %p75, %p76
      %p78 = scmp.ne.s32.totalorder %s69, %s70
      %p79 = scmp.eq.s32.totalorder %s17, 0
      %p80 = por %p78, %p79
      %p81 = scmp.ne.s32.totalorder %s69, %s70
      %p82 = scmp.eq.s32.totalorder %s18, 1
      %p83 = por %p81, %p82
      %p85 = scmp.ne.s32.totalorder %s70, %s84
      %p86 = scmp.eq.s32.totalorder %s18, 0
      %p87 = por %p85, %p86
      %s89 = sadd.s32 %s88, 1
      %p92 = scmp.eq.s32.totalorder %s12, 1
      %p93 = scmp.ne.s32.totalorder %s88, %s90
      %p94 = scmp.eq.s32.totalorder %s12, 0
      %p95 = por %p93, %p94
      %p96 = scmp.ne.s32.totalorder %s88, %s90
      %p97 = scmp.eq.s32.totalorder %s17, 1
      %p98 = por %p96, %p97
      %p99 = scmp.ne.s32.totalorder %s90, %s91
      %p100 = scmp.eq.s32.totalorder %s17, 0
      %p101 = por %p99, %p100
      %p102 = scmp.ne.s32.totalorder %s90, %s91
      %p103 = scmp.eq.s32.totalorder %s18, 1
      %p104 = por %p102, %p103
      %p106 = scmp.ne.s32.totalorder %s91, %s105
      %p107 = scmp.eq.s32.totalorder %s18, 0
      %p108 = por %p106, %p107
      %s110 = sadd.s32 %s109, 1
      %p113 = scmp.eq.s32.totalorder %s12, 1
      %p114 = scmp.ne.s32.totalorder %s109, %s111
      %p115 = scmp.eq.s32.totalorder %s12, 0
      %p116 = por %p114, %p115
      %p117 = scmp.ne.s32.totalorder %s109, %s111
      %p118 = scmp.eq.s32.totalorder %s17, 1
      %p119 = por %p117, %p118
      %p120 = scmp.ne.s32.totalorder %s111, %s112
      %p121 = scmp.eq.s32.totalorder %s17, 0
      %p122 = por %p120, %p121
      %p123 = scmp.ne.s32.totalorder %s111, %s112
      %p124 = scmp.eq.s32.totalorder %s18, 1
      %p125 = por %p123, %p124
      %p127 = scmp.ne.s32.totalorder %s112, %s126
      %p128 = scmp.eq.s32.totalorder %s18, 0
      %p129 = por %p127, %p128
      %s130 = ssub.s32 %s12, %s19
      %p131 = scmp.eq.s32.totalorder %s130, 0
      %s133 = sadd.s32 %s132, 1
      %s134 = scalar_select %p131, %s132, %s133
      %p137 = pneg %p131
      %p138 = scmp.eq.s32.totalorder %s12, 1
      %p139 = por %p137, %p138
      %p140 = scmp.ne.s32.totalorder %s132, %s135
      %p141 = scmp.eq.s32.totalorder %s12, 0
      %p142 = por %p140, %p141
      %p143 = scmp.ne.s32.totalorder %s132, %s135
      %p144 = scmp.eq.s32.totalorder %s17, 1
      %p145 = por %p143, %p144
      %p146 = scmp.ne.s32.totalorder %s135, %s136
      %p147 = scmp.eq.s32.totalorder %s17, 0
      %p148 = por %p146, %p147
      %p149 = scmp.ne.s32.totalorder %s135, %s136
      %p150 = scmp.eq.s32.totalorder %s18, 1
      %p151 = por %p149, %p150
      %p153 = scmp.ne.s32.totalorder %s136, %s152
      %p154 = scmp.eq.s32.totalorder %s18, 0
      %p155 = por %p153, %p154
      %p156 = scmp.le.s32.totalorder 1, %s12
      %p157 = scmp.lt.s32.totalorder %s12, 3
      %p158 = pnand %p156, %p157
      %p159 = pneg %p158
      // Predicated region
      $region9: #{encoder_forward.1} parent=5 // pred_check
        _
      $region10: #{encoder_forward.1} parent=5 // pred_check_branch
        %161 = sbr.rel (%p158) target = $region12
      $region11: #{encoder_forward.1} parent=5 // pred_region
        %s162 = ssub.s32 %s12, 1
        // Predicated region
        $region13: #{encoder_forward.1} parent=11 // pred_check
          %p163 = pneg %p59
        $region14: #{encoder_forward.1} parent=11 // pred_check_branch
          %165 = sbr.rel (%p163) target = $region16
        $region15: #{encoder_forward.1} parent=11 // pred_region
          _
        $region16: #{encoder_forward.1} parent=11 // pred_fallthru
          _
        // Predicated region
        $region17: #{encoder_forward.1} parent=11 // pred_check
          %p166 = pneg %p80
        $region18: #{encoder_forward.1} parent=11 // pred_check_branch
          %168 = sbr.rel (%p166) target = $region20
        $region19: #{encoder_forward.1} parent=11 // pred_region
          _
        $region20: #{encoder_forward.1} parent=11 // pred_fallthru
          _
        // Predicated region
        $region21: #{encoder_forward.1} parent=11 // pred_check
          %p169 = pneg %p101
        $region22: #{encoder_forward.1} parent=11 // pred_check_branch
          %171 = sbr.rel (%p169) target = $region24
        $region23: #{encoder_forward.1} parent=11 // pred_region
          %s173 = ssub.s32 4096, 4096
          %174 = vsyncadd [#allocation3], %s173
          %s175 = sshll.u32 [#allocation2], 4
          %s176 = int_to_ptr.vmem [resolvable:$true] %s175
          %181 = dma.hbm_to_vmem [thread:$0]  %s3, 4096, %s176, [#allocation3], 256, 256, 16
        $region24: #{encoder_forward.1} parent=11 // pred_fallthru
          _
        // Predicated region
        $region25: #{encoder_forward.1} parent=11 // pred_check
          %p182 = pneg %p122
        $region26: #{encoder_forward.1} parent=11 // pred_check_branch
          %184 = sbr.rel (%p182) target = $region28
        $region27: #{encoder_forward.1} parent=11 // pred_region
          _
        $region28: #{encoder_forward.1} parent=11 // pred_fallthru
          _
      $region12: #{encoder_forward.1} parent=5 // pred_fallthru
        _
      %p185 = scmp.lt.s32.totalorder %s12, 2
      // Predicated region
      $region29: #{encoder_forward.1} parent=5 // pred_check
        %p186 = pneg %p185
      $region30: #{encoder_forward.1} parent=5 // pred_check_branch
        %188 = sbr.rel (%p186) target = $region32
      $region31: #{encoder_forward.1} parent=5 // pred_region
        // Predicated region
        $region33: #{encoder_forward.1} parent=31 // pred_check
          %p189 = pneg %p32
        $region34: #{encoder_forward.1} parent=31 // pred_check_branch
          %191 = sbr.rel (%p189) target = $region36
        $region35: #{encoder_forward.1} parent=31 // pred_region
          %s192 = smul.u32 2, %s12
          %p193 = scmp.lt.s32.totalorder %s192, 3
          %s194 = scalar_select %p193, %s192, 3
          %s195 = smul.addr %s194, 8
          %s196 = scalar_lea.vmem %s0, %s195
          %s197 = smul.u32 2, %s12
        $region36: #{encoder_forward.1} parent=31 // pred_fallthru
          _
      $region32: #{encoder_forward.1} parent=5 // pred_fallthru
        _
      %p198 = scmp.le.s32.totalorder 1, %s12
      %p199 = scmp.lt.s32.totalorder %s12, 3
      %p200 = pnand %p198, %p199
      %p201 = pneg %p200
      // Predicated region
      $region37: #{encoder_forward.1} parent=5 // pred_check
        _
      $region38: #{encoder_forward.1} parent=5 // pred_check_branch
        %203 = sbr.rel (%p200) target = $region40
      $region39: #{encoder_forward.1} parent=5 // pred_region
        %s204 = ssub.s32 %s12, 1
        // Predicated region
        $region41: #{encoder_forward.1} parent=39 // pred_check
          %p205 = pneg %p101
        $region42: #{encoder_forward.1} parent=39 // pred_check_branch
          %207 = sbr.rel (%p205) target = $region44
        $region43: #{encoder_forward.1} parent=39 // pred_region
          %208 = dma.done [#allocation3], 4096
        $region44: #{encoder_forward.1} parent=39 // pred_fallthru
          _
        %s209 = smul.u32 2, %s17
        %p210 = scmp.lt.s32.totalorder %s209, 3
        %s211 = scalar_select %p210, %s209, 3
        %s212 = smul.addr %s211, 8
        %s213 = scalar_lea.vmem %s0, %s212
        %p214 = pneg %p38
        %p215 = pneg %p35
        %p216 = pneg %p59
        %p217 = pneg %p56
        %p218 = pneg %p80
        %p219 = pneg %p77
        %p220 = pneg %p101
        %p221 = pneg %p98
        %p222 = pneg %p122
        %p223 = pneg %p119
        %p224 = pneg %p148
        %p225 = pneg %p145
        %s226 = smul.u32 2, %s17
        %p227 = scmp.lt.s32.totalorder %s226, 3
        %s228 = scalar_select %p227, %s226, 3
        %s229 = smul.addr %s228, 2
        %s230 = smul.addr %s229, 8
        %s231 = scalar_lea.vmem %s5, %s230
        %s232 = smul.u32 2, %s17
        %p233 = scmp.lt.s32.totalorder %s232, 3
        %s234 = scalar_select %p233, %s232, 3
        %s235 = smul.addr %s234, 8
        %s236 = scalar_lea.vmem %s0, %s235
        %s237 = smul.u32 2, %s17
        %s238 = smul.u32 2, %s17
        %p239 = scmp.lt.s32.totalorder %s238, 3
        %s240 = scalar_select %p239, %s238, 3
        %s241 = smul.addr %s240, 2
        %s242 = smul.addr %s241, 8
        %s243 = scalar_lea.vmem %s5, %s242
        %s244 = smul.u32 2, %s17
        %v245 = vld [vmem:[%s236] sm:$0xff]
        %v246 = vld [vmem:[%s236 + $0x8] sm:$0xff]
        %v247 = vld [vmem:[%s1] sm:$0xff]
        %v248 = vld [vmem:[%s1 + $0x8] sm:$0xff]
        %v249 = vld [vmem:[%s1 + $0x10] sm:$0xff]
        %v250 = vld [vmem:[%s1 + $0x18] sm:$0xff]
        %v251 = vld [vmem:[%s1 + $0x20] sm:$0xff]
        %v252 = vld [vmem:[%s1 + $0x28] sm:$0xff]
        %v253 = vld [vmem:[%s1 + $0x30] sm:$0xff]
        %v254 = vld [vmem:[%s1 + $0x38] sm:$0xff]
        %v255 = vld [vmem:[%s1 + $0x40] sm:$0xff]
        %v256 = vld [vmem:[%s1 + $0x48] sm:$0xff]
        %v257 = vld [vmem:[%s1 + $0x50] sm:$0xff]
        %v258 = vld [vmem:[%s1 + $0x58] sm:$0xff]
        %v259 = vld [vmem:[%s1 + $0x60] sm:$0xff]
        %v260 = vld [vmem:[%s1 + $0x68] sm:$0xff]
        %v261 = vld [vmem:[%s1 + $0x70] sm:$0xff]
        %v262 = vld [vmem:[%s1 + $0x78] sm:$0xff]
        %v263 = vld [vmem:[%s2] sm:$0x1]
        %v265 = vlaneseq
        %v266 = vshrl.u32 %v265, 7
        %v267 = vsub.s32 0, %v266
        %v268 = vrot.slane %v263, %v267
        %270 = vmatprep.subr.mxu0 0.0
        %271 = vmatpush1.msra.mxu0 %v262
        %272 = vmatprep.subr.mxu0 0.0
        %273 = vmatpush1.msra.mxu0 %v261
        %274 = vmatprep.subr.mxu0 0.0
        %275 = vmatpush1.msra.mxu0 %v260
        %276 = vmatprep.subr.mxu0 0.0
        %277 = vmatpush1.msra.mxu0 %v259
        %278 = vmatprep.subr.mxu0 0.0
        %279 = vmatpush1.msra.mxu0 %v258
        %280 = vmatprep.subr.mxu0 0.0
        %281 = vmatpush1.msra.mxu0 %v257
        %282 = vmatprep.subr.mxu0 0.0
        %283 = vmatpush1.msra.mxu0 %v256
        %284 = vmatprep.subr.mxu0 0.0
        %285 = vmatpush1.msra.mxu0 %v255
        %286 = vmatprep.subr.mxu0 0.0
        %287 = vmatpush1.msra.mxu0 %v254
        %288 = vmatprep.subr.mxu0 0.0
        %289 = vmatpush1.msra.mxu0 %v253
        %290 = vmatprep.subr.mxu0 0.0
        %291 = vmatpush1.msra.mxu0 %v252
        %292 = vmatprep.subr.mxu0 0.0
        %293 = vmatpush1.msra.mxu0 %v251
        %294 = vmatprep.subr.mxu0 0.0
        %295 = vmatpush1.msra.mxu0 %v250
        %296 = vmatprep.subr.mxu0 0.0
        %297 = vmatpush1.msra.mxu0 %v249
        %298 = vmatprep.subr.mxu0 0.0
        %299 = vmatpush1.msra.mxu0 %v248
        %300 = vmatprep.subr.mxu0 0.0
        %301 = vmatpush1.msra.mxu0 %v247
        %302 = vmatprep.subr.mxu0 0.0
        %303 = vmatpush2.msra.mxu0 0.0
        %304 = vmatprep.subr.mxu0 0.0
        %305 = vmatpush2.msra.mxu0 0.0
        %306 = vmatprep.subr.mxu0 0.0
        %307 = vmatpush2.msra.mxu0 0.0
        %308 = vmatprep.subr.mxu0 0.0
        %309 = vmatpush2.msra.mxu0 0.0
        %310 = vmatprep.subr.mxu0 0.0
        %311 = vmatpush2.msra.mxu0 0.0
        %312 = vmatprep.subr.mxu0 0.0
        %313 = vmatpush2.msra.mxu0 0.0
        %314 = vmatprep.subr.mxu0 0.0
        %315 = vmatpush2.msra.mxu0 0.0
        %316 = vmatprep.subr.mxu0 0.0
        %317 = vmatpush2.msra.mxu0 0.0
        %318 = vmatprep.subr.mxu0 0.0
        %319 = vmatpush2.msra.mxu0 0.0
        %320 = vmatprep.subr.mxu0 0.0
        %321 = vmatpush2.msra.mxu0 0.0
        %322 = vmatprep.subr.mxu0 0.0
        %323 = vmatpush2.msra.mxu0 0.0
        %324 = vmatprep.subr.mxu0 0.0
        %325 = vmatpush2.msra.mxu0 0.0
        %326 = vmatprep.subr.mxu0 0.0
        %327 = vmatpush2.msra.mxu0 0.0
        %328 = vmatprep.subr.mxu0 0.0
        %329 = vmatpush2.msra.mxu0 0.0
        %330 = vmatprep.subr.mxu0 0.0
        %331 = vmatpush2.msra.mxu0 0.0
        %332 = vmatprep.subr.mxu0 0.0
        %333 = vmatpush2.msra.mxu0 0.0
        %334 = vmatprep.mubr.f32.mxu0 0.0
        %335 = vmatmul.mubr.f32.gmra.mxu0 %v245
        %v336 = vpop.f32.mrf.mxu0
        %v337 = vadd.f32 %v268, %v336
        %v338 = vpop.f32.mrf.mxu0
        %339 = vmatprep.mubr.f32.mxu0 0.0
        %340 = vmatmul.mubr.f32.gmra.mxu0 %v246
        %v341 = vpop.f32.mrf.mxu0
        %v342 = vadd.f32 %v268, %v341
        %v343 = vpop.f32.mrf.mxu0
        %344 = vdwg.mxu0
        %v345 = vmax.f32 %v337, 0.0
        %v346 = vmax.f32 %v342, 0.0
        %v347 = vld [vmem:[#allocation2] sm:$0xff]
        %v348 = vld [vmem:[#allocation2 + $0x8] sm:$0xff]
        %v349 = vld [vmem:[#allocation2 + $0x10] sm:$0xff]
        %v350 = vld [vmem:[#allocation2 + $0x18] sm:$0xff]
        %v351 = vld [vmem:[#allocation2 + $0x20] sm:$0xff]
        %v352 = vld [vmem:[#allocation2 + $0x28] sm:$0xff]
        %v353 = vld [vmem:[#allocation2 + $0x30] sm:$0xff]
        %v354 = vld [vmem:[#allocation2 + $0x38] sm:$0xff]
        %v355 = vld [vmem:[#allocation2 + $0x40] sm:$0xff]
        %v356 = vld [vmem:[#allocation2 + $0x48] sm:$0xff]
        %v357 = vld [vmem:[#allocation2 + $0x50] sm:$0xff]
        %v358 = vld [vmem:[#allocation2 + $0x58] sm:$0xff]
        %v359 = vld [vmem:[#allocation2 + $0x60] sm:$0xff]
        %v360 = vld [vmem:[#allocation2 + $0x68] sm:$0xff]
        %v361 = vld [vmem:[#allocation2 + $0x70] sm:$0xff]
        %v362 = vld [vmem:[#allocation2 + $0x78] sm:$0xff]
        %v363 = vld [vmem:[#allocation2 + $0x80] sm:$0xff]
        %v364 = vld [vmem:[#allocation2 + $0x88] sm:$0xff]
        %v365 = vld [vmem:[#allocation2 + $0x90] sm:$0xff]
        %v366 = vld [vmem:[#allocation2 + $0x98] sm:$0xff]
        %v367 = vld [vmem:[#allocation2 + $0xa0] sm:$0xff]
        %v368 = vld [vmem:[#allocation2 + $0xa8] sm:$0xff]
        %v369 = vld [vmem:[#allocation2 + $0xb0] sm:$0xff]
        %v370 = vld [vmem:[#allocation2 + $0xb8] sm:$0xff]
        %v371 = vld [vmem:[#allocation2 + $0xc0] sm:$0xff]
        %v372 = vld [vmem:[#allocation2 + $0xc8] sm:$0xff]
        %v373 = vld [vmem:[#allocation2 + $0xd0] sm:$0xff]
        %v374 = vld [vmem:[#allocation2 + $0xd8] sm:$0xff]
        %v375 = vld [vmem:[#allocation2 + $0xe0] sm:$0xff]
        %v376 = vld [vmem:[#allocation2 + $0xe8] sm:$0xff]
        %v377 = vld [vmem:[#allocation2 + $0xf0] sm:$0xff]
        %v378 = vld [vmem:[#allocation2 + $0xf8] sm:$0xff]
        %v379 = vld [vmem:[%s4] sm:$0x3]
        %v381 = vlaneseq
        %v382 = vshrl.u32 %v381, 7
        %v383 = vsub.s32 0, %v382
        %v384 = vrot.slane %v379, %v383
        %v385 = vlaneseq
        %v386 = vshrl.u32 %v385, 7
        %v387 = vsub.s32 1, %v386
        %v388 = vrot.slane %v379, %v387
        %391 = vmatprep.subr.mxu0 %v378
        %392 = vmatpush1.msra.mxu0 %v377
        %393 = vmatprep.subr.mxu0 %v376
        %394 = vmatpush1.msra.mxu0 %v375
        %395 = vmatprep.subr.mxu0 %v374
        %396 = vmatpush1.msra.mxu0 %v373
        %397 = vmatprep.subr.mxu0 %v372
        %398 = vmatpush1.msra.mxu0 %v371
        %399 = vmatprep.subr.mxu0 %v370
        %400 = vmatpush1.msra.mxu0 %v369
        %401 = vmatprep.subr.mxu0 %v368
        %402 = vmatpush1.msra.mxu0 %v367
        %403 = vmatprep.subr.mxu0 %v366
        %404 = vmatpush1.msra.mxu0 %v365
        %405 = vmatprep.subr.mxu0 %v364
        %406 = vmatpush1.msra.mxu0 %v363
        %407 = vmatprep.subr.mxu0 %v362
        %408 = vmatpush1.msra.mxu0 %v361
        %409 = vmatprep.subr.mxu0 %v360
        %410 = vmatpush1.msra.mxu0 %v359
        %411 = vmatprep.subr.mxu0 %v358
        %412 = vmatpush1.msra.mxu0 %v357
        %413 = vmatprep.subr.mxu0 %v356
        %414 = vmatpush1.msra.mxu0 %v355
        %415 = vmatprep.subr.mxu0 %v354
        %416 = vmatpush1.msra.mxu0 %v353
        %417 = vmatprep.subr.mxu0 %v352
        %418 = vmatpush1.msra.mxu0 %v351
        %419 = vmatprep.subr.mxu0 %v350
        %420 = vmatpush1.msra.mxu0 %v349
        %421 = vmatprep.subr.mxu0 %v348
        %422 = vmatpush1.msra.mxu0 %v347
        %423 = vmatprep.subr.mxu0 0.0
        %424 = vmatpush2.msra.mxu0 0.0
        %425 = vmatprep.subr.mxu0 0.0
        %426 = vmatpush2.msra.mxu0 0.0
        %427 = vmatprep.subr.mxu0 0.0
        %428 = vmatpush2.msra.mxu0 0.0
        %429 = vmatprep.subr.mxu0 0.0
        %430 = vmatpush2.msra.mxu0 0.0
        %431 = vmatprep.subr.mxu0 0.0
        %432 = vmatpush2.msra.mxu0 0.0
        %433 = vmatprep.subr.mxu0 0.0
        %434 = vmatpush2.msra.mxu0 0.0
        %435 = vmatprep.subr.mxu0 0.0
        %436 = vmatpush2.msra.mxu0 0.0
        %437 = vmatprep.subr.mxu0 0.0
        %438 = vmatpush2.msra.mxu0 0.0
        %439 = vmatprep.subr.mxu0 0.0
        %440 = vmatpush2.msra.mxu0 0.0
        %441 = vmatprep.subr.mxu0 0.0
        %442 = vmatpush2.msra.mxu0 0.0
        %443 = vmatprep.subr.mxu0 0.0
        %444 = vmatpush2.msra.mxu0 0.0
        %445 = vmatprep.subr.mxu0 0.0
        %446 = vmatpush2.msra.mxu0 0.0
        %447 = vmatprep.subr.mxu0 0.0
        %448 = vmatpush2.msra.mxu0 0.0
        %449 = vmatprep.subr.mxu0 0.0
        %450 = vmatpush2.msra.mxu0 0.0
        %451 = vmatprep.subr.mxu0 0.0
        %452 = vmatpush2.msra.mxu0 0.0
        %453 = vmatprep.subr.mxu0 0.0
        %454 = vmatpush2.msra.mxu0 0.0
        %455 = vmatprep.mubr.f32.mxu0 0.0
        %456 = vmatmul.mubr.f32.gmra.mxu0 %v345
        %v457 = vpop.f32.mrf.mxu0
        %v458 = vadd.f32 %v384, %v457
        %v459 = vpop.f32.mrf.mxu0
        %v460 = vadd.f32 %v388, %v459
        %461 = vmatprep.mubr.f32.mxu0 0.0
        %462 = vmatmul.mubr.f32.gmra.mxu0 %v346
        %v463 = vpop.f32.mrf.mxu0
        %v464 = vadd.f32 %v384, %v463
        %v465 = vpop.f32.mrf.mxu0
        %v466 = vadd.f32 %v388, %v465
        %467 = vdwg.mxu0
        %468 = vst [vmem:[%s243] sm:$0xff] %v458
        %469 = vst [vmem:[%s243 + $0x8] sm:$0xff] %v460
        %470 = vst [vmem:[%s243 + $0x10] sm:$0xff] %v464
        %471 = vst [vmem:[%s243 + $0x18] sm:$0xff] %v466
        %s472 = smul.u32 2, %s17
        %p473 = scmp.lt.s32.totalorder %s472, 3
        %s474 = scalar_select %p473, %s472, 3
        %s475 = smul.addr %s474, 2
        %s476 = smul.addr %s475, 8
        %s477 = scalar_lea.vmem %s5, %s476
        // Predicated region
        $region45: #{encoder_forward.1} parent=39 // pred_check
          %p478 = pneg %p145
        $region46: #{encoder_forward.1} parent=39 // pred_check_branch
          %480 = sbr.rel (%p478) target = $region48
        $region47: #{encoder_forward.1} parent=39 // pred_region
          %s481 = smul.u32 2, %s17
        $region48: #{encoder_forward.1} parent=39 // pred_fallthru
          _
      $region40: #{encoder_forward.1} parent=5 // pred_fallthru
        _
      %p482 = scmp.le.s32.totalorder 2, %s12
      // Predicated region
      $region49: #{encoder_forward.1} parent=5 // pred_check
        %p483 = pneg %p482
      $region50: #{encoder_forward.1} parent=5 // pred_check_branch
        %485 = sbr.rel (%p483) target = $region52
      $region51: #{encoder_forward.1} parent=5 // pred_region
        %s486 = ssub.s32 %s12, 2
        // Predicated region
        $region53: #{encoder_forward.1} parent=51 // pred_check
          %p487 = pneg %p151
        $region54: #{encoder_forward.1} parent=51 // pred_check_branch
          %489 = sbr.rel (%p487) target = $region56
        $region55: #{encoder_forward.1} parent=51 // pred_region
          %s490 = smul.u32 2, %s18
          %p491 = scmp.lt.s32.totalorder %s490, 3
          %s492 = scalar_select %p491, %s490, 3
          %s493 = smul.addr %s492, 2
          %s494 = smul.addr %s493, 8
          %s495 = scalar_lea.vmem %s5, %s494
        $region56: #{encoder_forward.1} parent=51 // pred_fallthru
          _
      $region52: #{encoder_forward.1} parent=5 // pred_fallthru
        _
    $region6: #{encoder_forward.1} parent=1 // loop_footer
      %s16 = sadd.s32 1, %s12
    $region7: #{encoder_forward.1} parent=1 // loop_footer_branch
      %11 = sbr.rel target = $region3
    $region8: #{encoder_forward.1} parent=1 // loop_exit
      _
    %496 = vsyncpa [#allocation3], 1
    %s497 = scalar_lea.sflag [#allocation3], 1
    %498 = vsyncpa %s497, 1

</llo_original>
